<compile_context>
chip_gen: v5e
topology: v5e:2x2
jax: 0.10.0
libtpu: 0.0.40
codegen_flags: <defaults>
</compile_context>

<pallas_src>
import functools
import math

import jax
import jax.numpy as jnp
import numpy as np
from jax.experimental import pallas as pl
from jax.experimental.pallas import tpu as pltpu


def _cdiv(a, b):
    return -(-a // b)


# ---------------------------------------------------------------------------
# Filter construction (deterministic, static -> numpy, baked in as constants)
# ---------------------------------------------------------------------------
def kaiser_sinc_filter1d(cutoff, half_width, kernel_size):
    even = kernel_size % 2 == 0
    half_size = kernel_size // 2
    delta_f = 4 * half_width
    A = 2.285 * (half_size - 1) * math.pi * delta_f + 7.95
    if A > 50.0:
        beta = 0.1102 * (A - 8.7)
    elif A >= 21.0:
        beta = 0.5842 * (A - 21) ** 0.4 + 0.07886 * (A - 21.0)
    else:
        beta = 0.0
    window = np.kaiser(kernel_size, beta)   # == torch.kaiser_window(periodic=False)
    if even:
        t = np.arange(-half_size, half_size) + 0.5
    else:
        t = np.arange(kernel_size) - half_size
    if cutoff == 0:
        filt = np.zeros_like(t, dtype=np.float64)
    else:
        filt = 2 * cutoff * window * np.sinc(2 * cutoff * t)
        filt = filt / filt.sum()
    return filt.astype(np.float64)          # (kernel_size,)


@functools.lru_cache(maxsize=None)
def _polyphase_taps(ratio, kernel_size):
    """Per output phase p: tuple of (input offset d, weight) such that
       out[q*ratio + p] = sum w * xp[q + d]  with xp = replicate-padded x."""
    s, K = ratio, kernel_size
    pad = K // s - 1
    pad_left = pad * s + (K - s) // 2
    filt = kaiser_sinc_filter1d(0.5 / s, 0.6 / s, K)
    taps = []
    for p in range(s):
        r = (p + pad_left) % s
        taps.append(tuple(((p + pad_left - k) // s, float(s) * float(filt[k]))
                          for k in range(r, K, s)))
    d_all = [d for ph in taps for d, _ in ph]
    return tuple(taps), min(d_all), max(d_all), pad


# ---------------------------------------------------------------------------
# Pallas kernel: polyphase FIR with in-kernel replicate padding
# ---------------------------------------------------------------------------
def _upsample_kernel(edges_ref, xl_ref, xa_ref, xr_ref, o_ref, *,
                     taps_by_phase, qb, ratio, pad, T, strided):
    j = pl.program_id(1)
    q0 = j * qb

    # (B*C, 256) edge array: cols [0,128) = broadcast of x[:, 0],
    #                        cols [128,256) = broadcast of x[:, T-1]
    left128 = edges_ref[:, :128]
    right_col = edges_ref[:, 128:129]
    right128 = edges_ref[:, 128:]

    # Left 128-col halo: for the first tile it must be the left-edge replicate
    # (its DMA'd contents are clamped / meaningless there).
    xl = jnp.where(j == 0, left128, xl_ref[...])

    # Main tile and right halo: any column whose raw index is >= T must be the
    # right-edge replicate (covers both the logical replicate padding and the
    # unspecified tail of partial / clamped blocks).
    u_main = jax.lax.broadcasted_iota(jnp.int32, (1, qb), 1)
    xa = jnp.where(q0 + u_main >= T, right_col, xa_ref[...])
    u_halo = jax.lax.broadcasted_iota(jnp.int32, (1, 128), 1)
    xr = jnp.where(q0 + qb + u_halo >= T, right128, xr_ref[...])

    # Window covering raw columns [q0-128, q0+qb+128); cast to f32 ONCE
    # (weights stay f32, accumulation is f32 even for bf16 inputs).
    xw = jnp.concatenate([xl, xa, xr], axis=-1).astype(jnp.float32)
    off = 128 - pad   # window column of xp[q0 - pad]

    for p, taps in enumerate(taps_by_phase):
        acc = None
        for d, w in taps:
            c = w * xw[:, off + d: off + d + qb]
            acc = c if acc is None else acc + c
        acc = acc.astype(o_ref.dtype)
        if strided:
            if ratio == 1:
                o_ref[...] = acc
            else:
                # in-kernel phase interleave: lanes p, p+s, p+2s, ...
                o_ref[:, pl.ds(p, qb, stride=ratio)] = acc
        else:
            # fallback layout: phase-separated, interleaved afterwards by XLA
            o_ref[p, :, :] = acc


# ---------------------------------------------------------------------------
# pallas_call builder (cached per static configuration)
# ---------------------------------------------------------------------------
@functools.lru_cache(maxsize=None)
def _build_pallas_fn(R, T, dt, s, K, qb, R_BLK, strided):
    dt = np.dtype(dt)
    taps_by_phase, _, _, pad = _polyphase_taps(s, K)
    n_q = _cdiv(T, qb)
    n_r = _cdiv(R, R_BLK)
    nb = qb // 128
    nb_total = max(_cdiv(T, 128), 1)
    T_out = T * s

    kernel = functools.partial(
        _upsample_kernel, taps_by_phase=taps_by_phase, qb=qb, ratio=s,
        pad=pad, T=T, strided=strided)

    in_specs = [
        # tiny edge-value array (index does not change along j -> no re-fetch)
        pl.BlockSpec((R_BLK, 256), lambda i, j: (i, 0)),
        # left 128-col halo (clamped for j==0; fully overwritten there)
        pl.BlockSpec((R_BLK, 128),
                     lambda i, j: (i, jnp.maximum(j * nb - 1, 0))),
        # main qb-col tile
        pl.BlockSpec((R_BLK, qb), lambda i, j: (i, j)),
        # right 128-col halo (clamped at the end; overwritten by replicate)
        pl.BlockSpec((R_BLK, 128),
                     lambda i, j: (i, jnp.minimum((j + 1) * nb, nb_total - 1))),
    ]
    if strided:
        out_shape = jax.ShapeDtypeStruct((R, T_out), dt)
        out_specs = pl.BlockSpec((R_BLK, qb * s), lambda i, j: (i, j))
    else:
        out_shape = jax.ShapeDtypeStruct((s, R, T), dt)
        out_specs = pl.BlockSpec((s, R_BLK, qb), lambda i, j: (0, i, j))

    call = pl.pallas_call(
        kernel,
        out_shape=out_shape,
        grid=(n_r, n_q),
        in_specs=in_specs,
        out_specs=out_specs,
        compiler_params=pltpu.CompilerParams(
            dimension_semantics=("parallel", "parallel"),
            vmem_limit_bytes=32 * 1024 * 1024,
        ),
    )

    def run(x2, edges):
        y = call(edges, x2, x2, x2)
        if not strided:
            y = jnp.moveaxis(y, 0, -1).reshape(R, T_out)
        return y

    return run


# ---------------------------------------------------------------------------
# Tile geometry & configuration selection
# ---------------------------------------------------------------------------
_QB_CANDIDATES = (2048, 1792, 1536, 1280, 1024, 896, 768, 640, 512, 384, 256, 128)
_VMEM_TILE_BUDGET = 16 * 1024 * 1024   # conservative (also fits v7x's 64 MiB)
_AOT_CHECK_ABOVE = 8 * 1024 * 1024     # AOT-compile-check configs bigger than this


def _vmem_estimate(R_BLK, qb, s, ib):
    pipeline = 2 * R_BLK * ((qb + 2 * 128 + 256) * ib + qb * s * ib)  # double-buffered I/O
    window = R_BLK * (qb + 256) * (4 + (ib if ib < 4 else 0))         # f32 window (+ raw copy)
    acc = 2 * R_BLK * qb * 4                                          # accumulator + slice temp
    out_tmp = R_BLK * qb * s * ib                                     # store-side cast temp
    return pipeline + window + acc + out_tmp


def _tile_geometry(R, T, dt, s):
    ib = np.dtype(dt).itemsize
    pack = max(8, 32 // max(ib, 1))                    # f32:8  bf16:16  int8/fp8:32
    R_BLK = min(256, pack * _cdiv(R, pack))
    qb = 128
    for cand in _QB_CANDIDATES:
        if _vmem_estimate(R_BLK, cand, s, ib) <= _VMEM_TILE_BUDGET:
            qb = cand
            break
    qb = min(qb, 128 * _cdiv(T, 128))
    # v7x has 2 TensorCores: make sure there are >=2 'parallel' grid steps
    # whenever the problem is big enough to split.
    if _cdiv(R, R_BLK) * _cdiv(T, qb) < 2:
        if R > pack:
            R_BLK = pack * _cdiv(_cdiv(R, 2), pack)
        elif T > 256 and qb > 128:
            qb = 128 * _cdiv(_cdiv(T, 128), 2)
    return qb, R_BLK


# -------- numpy reference over flattened rows (used by probes & tests) ------
def _ref_rows(x2, ratio, K):
    s = ratio
    pad = K // s - 1
    pad_left = pad * s + (K - s) // 2
    pad_right = pad * s + (K - s + 1) // 2
    filt = kaiser_sinc_filter1d(0.5 / s, 0.6 / s, K)
    x2 = np.asarray(x2, np.float64)
    R, T = x2.shape
    xp = np.pad(x2, ((0, 0), (pad, pad)), mode="edge")
    Tp = T + 2 * pad
    full = np.zeros((R, (Tp - 1) * s + K), np.float64)
    for m in range(Tp):
        full[:, m * s:m * s + K] += xp[:, m:m + 1] * filt[None, :]
    full *= s
    return full[:, pad_left: full.shape[-1] - pad_right]


@functools.lru_cache(maxsize=None)
def _strided_numeric_ok(s, K, dt):
    """Run a small end-to-end upsample with strided lane stores eagerly and
    compare against the direct conv_transpose reference.  Executed eagerly so
    it is valid even when upsample1d itself is traced under an outer jit."""
    if s == 1:
        return True
    try:
        dt = np.dtype(dt)
        R_p, T_p, qb_p, R_BLK_p = 16, 328, 128, 16   # 3 time tiles, both edges
        fn = _build_pallas_fn(R_p, T_p, dt, s, K, qb_p, R_BLK_p, True)
        xs = jax.random.normal(jax.random.PRNGKey(1234), (R_p, T_p),
                               dtype=jnp.float32).astype(dt)
        edges = jnp.concatenate(
            [jnp.broadcast_to(xs[:, :1], (R_p, 128)),
             jnp.broadcast_to(xs[:, T_p - 1:T_p], (R_p, 128))], axis=1)
        y = np.asarray(jax.block_until_ready(fn(xs, edges)), dtype=np.float32)
        want = _ref_rows(np.asarray(xs, np.float64), s, K)
        tol = 5e-2 if dt.itemsize < 4 else 2e-4
        return bool(np.allclose(y, want, rtol=tol, atol=tol))
    except Exception:
        return False


@functools.lru_cache(maxsize=None)
def _aot_config_ok(R, T, dt, s, K, qb, R_BLK, strided):
    """AOT-compile the exact production pallas_call configuration (catches
    lowering / VMEM failures before they surface inside a caller's jit)."""
    try:
        dt = np.dtype(dt)
        fn = _build_pallas_fn(R, T, dt, s, K, qb, R_BLK, strided)
        jax.jit(fn).lower(jax.ShapeDtypeStruct((R, T), dt),
                          jax.ShapeDtypeStruct((R, 256), dt)).compile()
        return True
    except Exception:
        return False


@functools.lru_cache(maxsize=None)
def _select_config(R, T, dt, s, K):
    dt = np.dtype(dt)
    ib = dt.itemsize
    qb0, R_BLK = _tile_geometry(R, T, dt, s)
    prefer_strided = _strided_numeric_ok(s, K, dt)
    modes = (True, False) if prefer_strided else (False,)
    qb_list = sorted({q for q in (qb0, 1024, 512, 256, 128) if q <= qb0},
                     reverse=True)
    for strided in modes:
        for qb in qb_list:
            if _vmem_estimate(R_BLK, qb, s, ib) <= _AOT_CHECK_ABOVE:
                return qb, R_BLK, strided            # small config: trust it
            if _aot_config_ok(R, T, dt, s, K, qb, R_BLK, strided):
                return qb, R_BLK, strided
    # last resort: smallest tiles, XLA-interleaved output; any remaining error
    # will surface (loudly) at the real call.
    return min(qb_list), R_BLK, False


# ---------------------------------------------------------------------------
# Wrapper
# ---------------------------------------------------------------------------
def upsample1d(x, ratio=2, kernel_size=None):
    """Pallas TPU equivalent of UpSample1d(ratio, kernel_size).forward, x = (B, C, T)."""
    s = int(ratio)
    K = int(6 * s // 2) * 2 if kernel_size is None else int(kernel_size)
    _, d_min, d_max, pad = _polyphase_taps(s, K)
    if not (pad >= 0 and d_min >= 0 and d_max <= 2 * pad and pad <= 128):
        # TODO(synk): custom (ratio, kernel_size) geometries whose taps fall
        # outside the replicate-padded window are not supported by this kernel.
        raise ValueError(f"unsupported (ratio={s}, kernel_size={K}) for the "
                         "polyphase Pallas kernel")

    B, C, T = x.shape
    R, T_out = B * C, T * s
    dt = np.dtype(x.dtype)

    qb, R_BLK, strided = _select_config(R, T, dt, s, K)
    fn = _build_pallas_fn(R, T, dt, s, K, qb, R_BLK, strided)

    x2 = x.reshape(R, T)
    # Tiny (R, 256) edge-value array: left/right replicate columns, so the
    # kernel never needs a padded copy of the input in HBM.
    edges = jnp.concatenate(
        [jnp.broadcast_to(x2[:, :1], (R, 128)),
         jnp.broadcast_to(x2[:, T - 1:T], (R, 128))], axis=1)

    y = fn(x2, edges)
    return y.reshape(B, C, T_out)


# ---------------------------------------------------------------------------
# Pure-numpy reference (direct conv_transpose1d semantics) for verification
# ---------------------------------------------------------------------------
def ref_upsample1d(x, ratio=2, kernel_size=None):
    s = ratio
    K = int(6 * s // 2) * 2 if kernel_size is None else kernel_size
    x = np.asarray(x, np.float64)
    B, C, T = x.shape
    out = _ref_rows(x.reshape(B * C, T), s, K)
    return out.reshape(B, C, T * s)


if __name__ == "__main__":
    key = jax.random.PRNGKey(0)
    k1, k2, k3 = jax.random.split(key, 3)

    # 1) module-default small case: (B, C, T) = (2, 4, 16), ratio=2
    x = jax.random.normal(k1, (2, 4, 16), dtype=jnp.float32)
    y = jax.block_until_ready(upsample1d(x, ratio=2))
    assert y.shape == (2, 4, 32), y.shape
    np.testing.assert_allclose(np.asarray(y), ref_upsample1d(np.asarray(x), 2),
                               rtol=1e-4, atol=1e-4)

    # 2) longer input -- exercises multi-tile time blocking, halos and the
    #    partial last tile (fused replicate padding at both edges)
    x2 = jax.random.normal(k2, (2, 8, 2600), dtype=jnp.float32)
    y2 = jax.block_until_ready(upsample1d(x2, ratio=2))
    assert y2.shape == (2, 8, 5200), y2.shape
    np.testing.assert_allclose(np.asarray(y2), ref_upsample1d(np.asarray(x2), 2),
                               rtol=1e-4, atol=1e-4)

    # 3) ratio=4 -- four interleaved phases
    x3 = jax.random.normal(k3, (2, 4, 40), dtype=jnp.float32)
    y3 = jax.block_until_ready(upsample1d(x3, ratio=4))
    assert y3.shape == (2, 4, 160), y3.shape
    np.testing.assert_allclose(np.asarray(y3), ref_upsample1d(np.asarray(x3), 4),
                               rtol=1e-4, atol=1e-4)

    # 4) bf16 input (f32 window cast hoisted, f32 weights & accumulation)
    xb = x.astype(jnp.bfloat16)
    yb = jax.block_until_ready(upsample1d(xb, ratio=2))
    np.testing.assert_allclose(np.asarray(yb, dtype=np.float32),
                               ref_upsample1d(np.asarray(xb, dtype=np.float32), 2),
                               rtol=5e-2, atol=5e-2)

    print("KERNEL_OK")
</pallas_src>

<mosaic_0001>
module attributes {stable_mosaic.version = 11 : i64} {
  func.func @_upsample_kernel(%arg0: i32, %arg1: i32, %arg2: memref<16x256xf32, #tpu.memory_space<vmem>>, %arg3: memref<16x128xf32, #tpu.memory_space<vmem>>, %arg4: memref<16x128xf32, #tpu.memory_space<vmem>>, %arg5: memref<16x128xf32, #tpu.memory_space<vmem>>, %arg6: memref<16x256xf32, #tpu.memory_space<vmem>>) attributes {dimension_semantics = [#tpu.dimension_semantics<parallel>, #tpu.dimension_semantics<parallel>], iteration_bounds = array<i64: 1, 3>, scalar_prefetch = 0 : i64, scratch_operands = 0 : i64, tpu.core_type = #tpu.core_type<tc>, window_params = [{transform_indices = @transform_0, window_bounds = array<i64: 16, 256>}, {transform_indices = @transform_1, window_bounds = array<i64: 16, 128>}, {transform_indices = @transform_2, window_bounds = array<i64: 16, 128>}, {transform_indices = @transform_3, window_bounds = array<i64: 16, 128>}, {transform_indices = @transform_4, window_bounds = array<i64: 16, 256>}]} {
    %c128_i32 = arith.constant 128 : i32
    %0 = arith.muli %arg1, %c128_i32 : i32
    %c0 = arith.constant 0 : index
    %c0_0 = arith.constant 0 : index
    %1 = vector.load %arg2[%c0, %c0_0] : memref<16x256xf32, #tpu.memory_space<vmem>>, vector<16x128xf32>
    %c0_1 = arith.constant 0 : index
    %c128 = arith.constant 128 : index
    %2 = vector.load %arg2[%c0_1, %c128] : memref<16x256xf32, #tpu.memory_space<vmem>>, vector<16x1xf32>
    %c0_2 = arith.constant 0 : index
    %c128_3 = arith.constant 128 : index
    %3 = vector.load %arg2[%c0_2, %c128_3] : memref<16x256xf32, #tpu.memory_space<vmem>>, vector<16x128xf32>
    %c0_i32 = arith.constant 0 : i32
    %4 = arith.cmpi eq, %arg1, %c0_i32 : i32
    %c0_4 = arith.constant 0 : index
    %c0_5 = arith.constant 0 : index
    %5 = vector.load %arg3[%c0_4, %c0_5] : memref<16x128xf32, #tpu.memory_space<vmem>>, vector<16x128xf32>
    %6 = arith.select %4, %1, %5 : vector<16x128xf32>
    %7 = tpu.iota {dimensions = array<i32: 1>} : vector<1x128xi32>
    %8 = vector.broadcast %0 : i32 to vector<1x128xi32>
    %9 = arith.addi %8, %7 : vector<1x128xi32>
    %c328_i32 = arith.constant 328 : i32
    %10 = vector.broadcast %c328_i32 : i32 to vector<1x128xi32>
    %11 = arith.cmpi sge, %9, %10 : vector<1x128xi32>
    %c0_6 = arith.constant 0 : index
    %c0_7 = arith.constant 0 : index
    %12 = vector.load %arg4[%c0_6, %c0_7] : memref<16x128xf32, #tpu.memory_space<vmem>>, vector<16x128xf32>
    %13 = vector.shape_cast %11 : vector<1x128xi1> to vector<1x128xi1>
    %14 = vector.broadcast %13 : vector<1x128xi1> to vector<16x128xi1>
    %15 = vector.shape_cast %2 : vector<16x1xf32> to vector<16x1xf32>
    %16 = vector.broadcast %15 : vector<16x1xf32> to vector<16x128xf32>
    %17 = arith.select %14, %16, %12 : vector<16x128xi1>, vector<16x128xf32>
    %18 = tpu.iota {dimensions = array<i32: 1>} : vector<1x128xi32>
    %c128_i32_8 = arith.constant 128 : i32
    %19 = arith.addi %0, %c128_i32_8 : i32
    %20 = vector.broadcast %19 : i32 to vector<1x128xi32>
    %21 = arith.addi %20, %18 : vector<1x128xi32>
    %c328_i32_9 = arith.constant 328 : i32
    %22 = vector.broadcast %c328_i32_9 : i32 to vector<1x128xi32>
    %23 = arith.cmpi sge, %21, %22 : vector<1x128xi32>
    %c0_10 = arith.constant 0 : index
    %c0_11 = arith.constant 0 : index
    %24 = vector.load %arg5[%c0_10, %c0_11] : memref<16x128xf32, #tpu.memory_space<vmem>>, vector<16x128xf32>
    %25 = vector.shape_cast %23 : vector<1x128xi1> to vector<1x128xi1>
    %26 = vector.broadcast %25 : vector<1x128xi1> to vector<16x128xi1>
    %27 = arith.select %26, %3, %24 : vector<16x128xi1>, vector<16x128xf32>
    %28 = tpu.concatenate %6, %17, %27 in 1 : vector<16x128xf32>, vector<16x128xf32>, vector<16x128xf32> -> vector<16x384xf32>
    %29 = vector.extract_strided_slice %28 {offsets = [0, 130], sizes = [16, 128], strides = [1, 1]} : vector<16x384xf32> to vector<16x128xf32>
    %cst = arith.constant 0.0187789276 : f32
    %30 = vector.broadcast %cst : f32 to vector<16x128xf32>
    %31 = arith.mulf %30, %29 : vector<16x128xf32>
    %32 = vector.extract_strided_slice %28 {offsets = [0, 129], sizes = [16, 128], strides = [1, 1]} : vector<16x384xf32> to vector<16x128xf32>
    %cst_12 = arith.constant -0.115314752 : f32
    %33 = vector.broadcast %cst_12 : f32 to vector<16x128xf32>
    %34 = arith.mulf %33, %32 : vector<16x128xf32>
    %35 = arith.addf %31, %34 : vector<16x128xf32>
    %36 = vector.extract_strided_slice %28 {offsets = [0, 128], sizes = [16, 128], strides = [1, 1]} : vector<16x384xf32> to vector<16x128xf32>
    %cst_13 = arith.constant 0.886419594 : f32
    %37 = vector.broadcast %cst_13 : f32 to vector<16x128xf32>
    %38 = arith.mulf %37, %36 : vector<16x128xf32>
    %39 = arith.addf %35, %38 : vector<16x128xf32>
    %40 = vector.extract_strided_slice %28 {offsets = [0, 127], sizes = [16, 128], strides = [1, 1]} : vector<16x384xf32> to vector<16x128xf32>
    %cst_14 = arith.constant 0.257145226 : f32
    %41 = vector.broadcast %cst_14 : f32 to vector<16x128xf32>
    %42 = arith.mulf %41, %40 : vector<16x128xf32>
    %43 = arith.addf %39, %42 : vector<16x128xf32>
    %44 = vector.extract_strided_slice %28 {offsets = [0, 126], sizes = [16, 128], strides = [1, 1]} : vector<16x384xf32> to vector<16x128xf32>
    %cst_15 = arith.constant -0.0510869287 : f32
    %45 = vector.broadcast %cst_15 : f32 to vector<16x128xf32>
    %46 = arith.mulf %45, %44 : vector<16x128xf32>
    %47 = arith.addf %43, %46 : vector<16x128xf32>
    %48 = vector.extract_strided_slice %28 {offsets = [0, 125], sizes = [16, 128], strides = [1, 1]} : vector<16x384xf32> to vector<16x128xf32>
    %cst_16 = arith.constant 0.00405793311 : f32
    %49 = vector.broadcast %cst_16 : f32 to vector<16x128xf32>
    %50 = arith.mulf %49, %48 : vector<16x128xf32>
    %51 = arith.addf %47, %50 : vector<16x128xf32>
    %c0_17 = arith.constant 0 : index
    %c0_18 = arith.constant 0 : index
    %52 = tpu.strided_load %arg6[%c0_17, %c0_18] {strides = array<i32: 1, 2>} : memref<16x256xf32, #tpu.memory_space<vmem>>, vector<16x128xf32>
    tpu.strided_store %arg6[%c0_17, %c0_18], %51 {strides = array<i32: 1, 2>} : memref<16x256xf32, #tpu.memory_space<vmem>>, vector<16x128xf32>
    %53 = vector.extract_strided_slice %28 {offsets = [0, 131], sizes = [16, 128], strides = [1, 1]} : vector<16x384xf32> to vector<16x128xf32>
    %cst_19 = arith.constant 0.00405793311 : f32
    %54 = vector.broadcast %cst_19 : f32 to vector<16x128xf32>
    %55 = arith.mulf %54, %53 : vector<16x128xf32>
    %56 = vector.extract_strided_slice %28 {offsets = [0, 130], sizes = [16, 128], strides = [1, 1]} : vector<16x384xf32> to vector<16x128xf32>
    %cst_20 = arith.constant -0.0510869287 : f32
    %57 = vector.broadcast %cst_20 : f32 to vector<16x128xf32>
    %58 = arith.mulf %57, %56 : vector<16x128xf32>
    %59 = arith.addf %55, %58 : vector<16x128xf32>
    %60 = vector.extract_strided_slice %28 {offsets = [0, 129], sizes = [16, 128], strides = [1, 1]} : vector<16x384xf32> to vector<16x128xf32>
    %cst_21 = arith.constant 0.257145226 : f32
    %61 = vector.broadcast %cst_21 : f32 to vector<16x128xf32>
    %62 = arith.mulf %61, %60 : vector<16x128xf32>
    %63 = arith.addf %59, %62 : vector<16x128xf32>
    %64 = vector.extract_strided_slice %28 {offsets = [0, 128], sizes = [16, 128], strides = [1, 1]} : vector<16x384xf32> to vector<16x128xf32>
    %cst_22 = arith.constant 0.886419594 : f32
    %65 = vector.broadcast %cst_22 : f32 to vector<16x128xf32>
    %66 = arith.mulf %65, %64 : vector<16x128xf32>
    %67 = arith.addf %63, %66 : vector<16x128xf32>
    %68 = vector.extract_strided_slice %28 {offsets = [0, 127], sizes = [16, 128], strides = [1, 1]} : vector<16x384xf32> to vector<16x128xf32>
    %cst_23 = arith.constant -0.115314752 : f32
    %69 = vector.broadcast %cst_23 : f32 to vector<16x128xf32>
    %70 = arith.mulf %69, %68 : vector<16x128xf32>
    %71 = arith.addf %67, %70 : vector<16x128xf32>
    %72 = vector.extract_strided_slice %28 {offsets = [0, 126], sizes = [16, 128], strides = [1, 1]} : vector<16x384xf32> to vector<16x128xf32>
    %cst_24 = arith.constant 0.0187789276 : f32
    %73 = vector.broadcast %cst_24 : f32 to vector<16x128xf32>
    %74 = arith.mulf %73, %72 : vector<16x128xf32>
    %75 = arith.addf %71, %74 : vector<16x128xf32>
    %c0_25 = arith.constant 0 : index
    %c1 = arith.constant 1 : index
    %76 = tpu.strided_load %arg6[%c0_25, %c1] {strides = array<i32: 1, 2>} : memref<16x256xf32, #tpu.memory_space<vmem>>, vector<16x128xf32>
    tpu.strided_store %arg6[%c0_25, %c1], %75 {strides = array<i32: 1, 2>} : memref<16x256xf32, #tpu.memory_space<vmem>>, vector<16x128xf32>
    return
  }
  func.func @transform_0(%arg0: i32, %arg1: i32) -> (i32, i32) {
    %c0_i32 = arith.constant 0 : i32
    %c0_i32_0 = arith.constant 0 : i32
    return %arg0, %c0_i32 : i32, i32
  }
  func.func @transform_1(%arg0: i32, %arg1: i32) -> (i32, i32) {
    %c1_i32 = arith.constant 1 : i32
    %0 = arith.muli %arg1, %c1_i32 : i32
    %c1_i32_0 = arith.constant 1 : i32
    %1 = arith.subi %0, %c1_i32_0 : i32
    %c0_i32 = arith.constant 0 : i32
    %2 = arith.maxsi %1, %c0_i32 : i32
    %c0_i32_1 = arith.constant 0 : i32
    return %arg0, %2 : i32, i32
  }
  func.func @transform_2(%arg0: i32, %arg1: i32) -> (i32, i32) {
    %c0_i32 = arith.constant 0 : i32
    return %arg0, %arg1 : i32, i32
  }
  func.func @transform_3(%arg0: i32, %arg1: i32) -> (i32, i32) {
    %c1_i32 = arith.constant 1 : i32
    %0 = arith.addi %arg1, %c1_i32 : i32
    %c1_i32_0 = arith.constant 1 : i32
    %1 = arith.muli %0, %c1_i32_0 : i32
    %c2_i32 = arith.constant 2 : i32
    %2 = arith.minsi %1, %c2_i32 : i32
    %c0_i32 = arith.constant 0 : i32
    return %arg0, %2 : i32, i32
  }
  func.func @transform_4(%arg0: i32, %arg1: i32) -> (i32, i32) {
    %c0_i32 = arith.constant 0 : i32
    return %arg0, %arg1 : i32, i32
  }
}

module attributes {stable_mosaic.version = 11 : i64} {
  func.func @_upsample_kernel(%arg0: i32, %arg1: i32, %arg2: memref<8x256xf32, #tpu.memory_space<vmem>>, %arg3: memref<8x128xf32, #tpu.memory_space<vmem>>, %arg4: memref<8x128xf32, #tpu.memory_space<vmem>>, %arg5: memref<8x128xf32, #tpu.memory_space<vmem>>, %arg6: memref<2x8x128xf32, #tpu.memory_space<vmem>>) attributes {dimension_semantics = [#tpu.dimension_semantics<parallel>, #tpu.dimension_semantics<parallel>], iteration_bounds = array<i64: 1, 1>, scalar_prefetch = 0 : i64, scratch_operands = 0 : i64, tpu.core_type = #tpu.core_type<tc>, window_params = [{transform_indices = @transform_0, window_bounds = array<i64: 8, 256>}, {transform_indices = @transform_1, window_bounds = array<i64: 8, 128>}, {transform_indices = @transform_2, window_bounds = array<i64: 8, 128>}, {transform_indices = @transform_3, window_bounds = array<i64: 8, 128>}, {transform_indices = @transform_4, window_bounds = array<i64: 2, 8, 128>}]} {
    %c128_i32 = arith.constant 128 : i32
    %0 = arith.muli %arg1, %c128_i32 : i32
    %c0 = arith.constant 0 : index
    %c0_0 = arith.constant 0 : index
    %1 = vector.load %arg2[%c0, %c0_0] : memref<8x256xf32, #tpu.memory_space<vmem>>, vector<8x128xf32>
    %c0_1 = arith.constant 0 : index
    %c128 = arith.constant 128 : index
    %2 = vector.load %arg2[%c0_1, %c128] : memref<8x256xf32, #tpu.memory_space<vmem>>, vector<8x1xf32>
    %c0_2 = arith.constant 0 : index
    %c128_3 = arith.constant 128 : index
    %3 = vector.load %arg2[%c0_2, %c128_3] : memref<8x256xf32, #tpu.memory_space<vmem>>, vector<8x128xf32>
    %c0_i32 = arith.constant 0 : i32
    %4 = arith.cmpi eq, %arg1, %c0_i32 : i32
    %c0_4 = arith.constant 0 : index
    %c0_5 = arith.constant 0 : index
    %5 = vector.load %arg3[%c0_4, %c0_5] : memref<8x128xf32, #tpu.memory_space<vmem>>, vector<8x128xf32>
    %6 = arith.select %4, %1, %5 : vector<8x128xf32>
    %7 = tpu.iota {dimensions = array<i32: 1>} : vector<1x128xi32>
    %8 = vector.broadcast %0 : i32 to vector<1x128xi32>
    %9 = arith.addi %8, %7 : vector<1x128xi32>
    %c16_i32 = arith.constant 16 : i32
    %10 = vector.broadcast %c16_i32 : i32 to vector<1x128xi32>
    %11 = arith.cmpi sge, %9, %10 : vector<1x128xi32>
    %c0_6 = arith.constant 0 : index
    %c0_7 = arith.constant 0 : index
    %12 = vector.load %arg4[%c0_6, %c0_7] : memref<8x128xf32, #tpu.memory_space<vmem>>, vector<8x128xf32>
    %13 = vector.shape_cast %11 : vector<1x128xi1> to vector<1x128xi1>
    %14 = vector.broadcast %13 : vector<1x128xi1> to vector<8x128xi1>
    %15 = vector.shape_cast %2 : vector<8x1xf32> to vector<8x1xf32>
    %16 = vector.broadcast %15 : vector<8x1xf32> to vector<8x128xf32>
    %17 = arith.select %14, %16, %12 : vector<8x128xi1>, vector<8x128xf32>
    %18 = tpu.iota {dimensions = array<i32: 1>} : vector<1x128xi32>
    %c128_i32_8 = arith.constant 128 : i32
    %19 = arith.addi %0, %c128_i32_8 : i32
    %20 = vector.broadcast %19 : i32 to vector<1x128xi32>
    %21 = arith.addi %20, %18 : vector<1x128xi32>
    %c16_i32_9 = arith.constant 16 : i32
    %22 = vector.broadcast %c16_i32_9 : i32 to vector<1x128xi32>
    %23 = arith.cmpi sge, %21, %22 : vector<1x128xi32>
    %c0_10 = arith.constant 0 : index
    %c0_11 = arith.constant 0 : index
    %24 = vector.load %arg5[%c0_10, %c0_11] : memref<8x128xf32, #tpu.memory_space<vmem>>, vector<8x128xf32>
    %25 = vector.shape_cast %23 : vector<1x128xi1> to vector<1x128xi1>
    %26 = vector.broadcast %25 : vector<1x128xi1> to vector<8x128xi1>
    %27 = arith.select %26, %3, %24 : vector<8x128xi1>, vector<8x128xf32>
    %28 = tpu.concatenate %6, %17, %27 in 1 : vector<8x128xf32>, vector<8x128xf32>, vector<8x128xf32> -> vector<8x384xf32>
    %29 = vector.extract_strided_slice %28 {offsets = [0, 130], sizes = [8, 128], strides = [1, 1]} : vector<8x384xf32> to vector<8x128xf32>
    %cst = arith.constant 0.0187789276 : f32
    %30 = vector.broadcast %cst : f32 to vector<8x128xf32>
    %31 = arith.mulf %30, %29 : vector<8x128xf32>
    %32 = vector.extract_strided_slice %28 {offsets = [0, 129], sizes = [8, 128], strides = [1, 1]} : vector<8x384xf32> to vector<8x128xf32>
    %cst_12 = arith.constant -0.115314752 : f32
    %33 = vector.broadcast %cst_12 : f32 to vector<8x128xf32>
    %34 = arith.mulf %33, %32 : vector<8x128xf32>
    %35 = arith.addf %31, %34 : vector<8x128xf32>
    %36 = vector.extract_strided_slice %28 {offsets = [0, 128], sizes = [8, 128], strides = [1, 1]} : vector<8x384xf32> to vector<8x128xf32>
    %cst_13 = arith.constant 0.886419594 : f32
    %37 = vector.broadcast %cst_13 : f32 to vector<8x128xf32>
    %38 = arith.mulf %37, %36 : vector<8x128xf32>
    %39 = arith.addf %35, %38 : vector<8x128xf32>
    %40 = vector.extract_strided_slice %28 {offsets = [0, 127], sizes = [8, 128], strides = [1, 1]} : vector<8x384xf32> to vector<8x128xf32>
    %cst_14 = arith.constant 0.257145226 : f32
    %41 = vector.broadcast %cst_14 : f32 to vector<8x128xf32>
    %42 = arith.mulf %41, %40 : vector<8x128xf32>
    %43 = arith.addf %39, %42 : vector<8x128xf32>
    %44 = vector.extract_strided_slice %28 {offsets = [0, 126], sizes = [8, 128], strides = [1, 1]} : vector<8x384xf32> to vector<8x128xf32>
    %cst_15 = arith.constant -0.0510869287 : f32
    %45 = vector.broadcast %cst_15 : f32 to vector<8x128xf32>
    %46 = arith.mulf %45, %44 : vector<8x128xf32>
    %47 = arith.addf %43, %46 : vector<8x128xf32>
    %48 = vector.extract_strided_slice %28 {offsets = [0, 125], sizes = [8, 128], strides = [1, 1]} : vector<8x384xf32> to vector<8x128xf32>
    %cst_16 = arith.constant 0.00405793311 : f32
    %49 = vector.broadcast %cst_16 : f32 to vector<8x128xf32>
    %50 = arith.mulf %49, %48 : vector<8x128xf32>
    %51 = arith.addf %47, %50 : vector<8x128xf32>
    %c0_17 = arith.constant 0 : index
    %c0_18 = arith.constant 0 : index
    %c0_19 = arith.constant 0 : index
    %52 = vector.load %arg6[%c0_17, %c0_18, %c0_19] : memref<2x8x128xf32, #tpu.memory_space<vmem>>, vector<1x8x128xf32>
    %53 = vector.shape_cast %52 : vector<1x8x128xf32> to vector<8x128xf32>
    %54 = vector.shape_cast %51 : vector<8x128xf32> to vector<1x8x128xf32>
    tpu.vector_store %arg6[%c0_17, %c0_18, %c0_19], %54 {strides = array<i32>} : memref<2x8x128xf32, #tpu.memory_space<vmem>>, vector<1x8x128xf32>,
    %55 = vector.extract_strided_slice %28 {offsets = [0, 131], sizes = [8, 128], strides = [1, 1]} : vector<8x384xf32> to vector<8x128xf32>
    %cst_20 = arith.constant 0.00405793311 : f32
    %56 = vector.broadcast %cst_20 : f32 to vector<8x128xf32>
    %57 = arith.mulf %56, %55 : vector<8x128xf32>
    %58 = vector.extract_strided_slice %28 {offsets = [0, 130], sizes = [8, 128], strides = [1, 1]} : vector<8x384xf32> to vector<8x128xf32>
    %cst_21 = arith.constant -0.0510869287 : f32
    %59 = vector.broadcast %cst_21 : f32 to vector<8x128xf32>
    %60 = arith.mulf %59, %58 : vector<8x128xf32>
    %61 = arith.addf %57, %60 : vector<8x128xf32>
    %62 = vector.extract_strided_slice %28 {offsets = [0, 129], sizes = [8, 128], strides = [1, 1]} : vector<8x384xf32> to vector<8x128xf32>
    %cst_22 = arith.constant 0.257145226 : f32
    %63 = vector.broadcast %cst_22 : f32 to vector<8x128xf32>
    %64 = arith.mulf %63, %62 : vector<8x128xf32>
    %65 = arith.addf %61, %64 : vector<8x128xf32>
    %66 = vector.extract_strided_slice %28 {offsets = [0, 128], sizes = [8, 128], strides = [1, 1]} : vector<8x384xf32> to vector<8x128xf32>
    %cst_23 = arith.constant 0.886419594 : f32
    %67 = vector.broadcast %cst_23 : f32 to vector<8x128xf32>
    %68 = arith.mulf %67, %66 : vector<8x128xf32>
    %69 = arith.addf %65, %68 : vector<8x128xf32>
    %70 = vector.extract_strided_slice %28 {offsets = [0, 127], sizes = [8, 128], strides = [1, 1]} : vector<8x384xf32> to vector<8x128xf32>
    %cst_24 = arith.constant -0.115314752 : f32
    %71 = vector.broadcast %cst_24 : f32 to vector<8x128xf32>
    %72 = arith.mulf %71, %70 : vector<8x128xf32>
    %73 = arith.addf %69, %72 : vector<8x128xf32>
    %74 = vector.extract_strided_slice %28 {offsets = [0, 126], sizes = [8, 128], strides = [1, 1]} : vector<8x384xf32> to vector<8x128xf32>
    %cst_25 = arith.constant 0.0187789276 : f32
    %75 = vector.broadcast %cst_25 : f32 to vector<8x128xf32>
    %76 = arith.mulf %75, %74 : vector<8x128xf32>
    %77 = arith.addf %73, %76 : vector<8x128xf32>
    %c1 = arith.constant 1 : index
    %c0_26 = arith.constant 0 : index
    %c0_27 = arith.constant 0 : index
    %78 = vector.load %arg6[%c1, %c0_26, %c0_27] : memref<2x8x128xf32, #tpu.memory_space<vmem>>, vector<1x8x128xf32>
    %79 = vector.shape_cast %78 : vector<1x8x128xf32> to vector<8x128xf32>
    %80 = vector.shape_cast %77 : vector<8x128xf32> to vector<1x8x128xf32>
    tpu.vector_store %arg6[%c1, %c0_26, %c0_27], %80 {strides = array<i32>} : memref<2x8x128xf32, #tpu.memory_space<vmem>>, vector<1x8x128xf32>,
    return
  }
  func.func @transform_0(%arg0: i32, %arg1: i32) -> (i32, i32) {
    %c0_i32 = arith.constant 0 : i32
    %c0_i32_0 = arith.constant 0 : i32
    return %arg0, %c0_i32 : i32, i32
  }
  func.func @transform_1(%arg0: i32, %arg1: i32) -> (i32, i32) {
    %c1_i32 = arith.constant 1 : i32
    %0 = arith.muli %arg1, %c1_i32 : i32
    %c1_i32_0 = arith.constant 1 : i32
    %1 = arith.subi %0, %c1_i32_0 : i32
    %c0_i32 = arith.constant 0 : i32
    %2 = arith.maxsi %1, %c0_i32 : i32
    %c0_i32_1 = arith.constant 0 : i32
    return %arg0, %2 : i32, i32
  }
  func.func @transform_2(%arg0: i32, %arg1: i32) -> (i32, i32) {
    %c0_i32 = arith.constant 0 : i32
    return %arg0, %arg1 : i32, i32
  }
  func.func @transform_3(%arg0: i32, %arg1: i32) -> (i32, i32) {
    %c1_i32 = arith.constant 1 : i32
    %0 = arith.addi %arg1, %c1_i32 : i32
    %c1_i32_0 = arith.constant 1 : i32
    %1 = arith.muli %0, %c1_i32_0 : i32
    %c0_i32 = arith.constant 0 : i32
    %2 = arith.minsi %1, %c0_i32 : i32
    %c0_i32_1 = arith.constant 0 : i32
    return %arg0, %2 : i32, i32
  }
  func.func @transform_4(%arg0: i32, %arg1: i32) -> (i32, i32, i32) {
    %c0_i32 = arith.constant 0 : i32
    %c0_i32_0 = arith.constant 0 : i32
    return %c0_i32, %arg0, %arg1 : i32, i32, i32
  }
}

</mosaic_0001>

<llo_original>
// kernel: tpu_custom_call.1
$region0: #{tpu_custom_call.1}
  #allocation0 [shape = 'u32[]', space=smem, size = 0x4, offset = 0x4, fixed_abs, tag = 'smem constant byte address 0x4 - core index']
  #allocation1 [shape = 'u32[72,128]{1,0:T(1,128)}', space=vmem, size = 0x9000, scoped, tag = 'internal scratch']
  %s0 = inlined_call_operand.hbm [shape: f32[8,256], index: 0, kind: input, shape index: {}]
  %s1 = inlined_call_operand.hbm [shape: f32[8,16], index: 1, kind: input, shape index: {}]
  %s2 = inlined_call_operand.hbm [shape: f32[8,16], index: 2, kind: input, shape index: {}]
  %s3 = inlined_call_operand.hbm [shape: f32[8,16], index: 3, kind: input, shape index: {}]
  %s4 = inlined_call_operand.hbm [shape: f32[2,8,16], index: 4, kind: output, shape index: {}]
  %s5 = sld [smem:[#allocation0]]
  $region42: #{tpu_custom_call.1} parent=0
    _
  %s7 = ssub.s32 1, %s5
  %s8 = scalar_select 0, %s7, %s5
  $region1: #{tpu_custom_call.1} parent=0
    #allocation2 [shape = 'u8[8192]{0}', space=vmem, size = 0x2000, scoped, tag = 'input window, operand 0, single buffered']
    #allocation3 [shape = 's32[1]{0}', space=sflag, size = 0x4, scoped, tag = 'scoped memory for tpu_custom_call.1']
    #allocation4 [shape = 's32[1]{0}', space=sflag, size = 0x4, scoped, tag = 'scoped memory for tpu_custom_call.1']
    #allocation5 [shape = 'u8[4096]{0}', space=vmem, size = 0x1000, scoped, tag = 'input window, operand 1, single buffered']
    #allocation6 [shape = 's32[1]{0}', space=sflag, size = 0x4, scoped, tag = 'scoped memory for tpu_custom_call.1']
    #allocation7 [shape = 'u8[4096]{0}', space=vmem, size = 0x1000, scoped, tag = 'input window, operand 2, single buffered']
    #allocation8 [shape = 'u8[4096]{0}', space=vmem, size = 0x1000, scoped, tag = 'input window, operand 3, single buffered']
    #allocation9 [shape = 's32[1]{0}', space=sflag, size = 0x4, scoped, tag = 'scoped memory for tpu_custom_call.1']
    #allocation10 [shape = 'u8[8192]{0}', space=vmem, size = 0x2000, scoped, tag = 'output window, operand 0, single buffered']
    %9 = vsyncpa [#allocation3], 0
    %10 = vsyncpa [#allocation6], 0
    %11 = vsyncpa [#allocation9], 0
    %12 = vsyncpa [#allocation4], 0
    // Predicated region
    $region2: #{tpu_custom_call.1} parent=1 // pred_check
      _
    $region3: #{tpu_custom_call.1} parent=1 // pred_check_branch
      %14 = sbr.rel (0) target = $region5
    $region4: #{tpu_custom_call.1} parent=1 // pred_region
      %16 = vsyncadd [#allocation3], 0
      %s18 = sshll.u32 %s0, 4
      %s19 = int_to_ptr.hbm [resolvable:$true] %s18
      %s20 = sshll.u32 [#allocation2], 4
      %s21 = int_to_ptr.vmem [resolvable:$true] %s20
      %23 = dma.hbm_to_vmem [thread:$0]  %s19, 256, %s21, [#allocation3]
    $region5: #{tpu_custom_call.1} parent=1 // pred_fallthru
      _
    // Predicated region
    $region6: #{tpu_custom_call.1} parent=1 // pred_check
      _
    $region7: #{tpu_custom_call.1} parent=1 // pred_check_branch
      %25 = sbr.rel (0) target = $region9
    $region8: #{tpu_custom_call.1} parent=1 // pred_region
      %s26 = ssub.s32 0, 1
      %p27 = scmp.gt.s32.totalorder %s26, 0
      %s28 = scalar_select %p27, %s26, 0
      %30 = vsyncadd [#allocation6], 0
      %s31 = smul.addr %s28, 8
      %s32 = scalar_lea.hbm %s1, %s31
      %s34 = sshll.u32 %s32, 4
      %s35 = int_to_ptr.hbm [resolvable:$true] %s34
      %s36 = sshll.u32 [#allocation5], 4
      %s37 = int_to_ptr.vmem [resolvable:$true] %s36
      %39 = dma.hbm_to_vmem [thread:$0]  %s35, 128, %s37, [#allocation6]
    $region9: #{tpu_custom_call.1} parent=1 // pred_fallthru
      _
    // Predicated region
    $region10: #{tpu_custom_call.1} parent=1 // pred_check
      _
    $region11: #{tpu_custom_call.1} parent=1 // pred_check_branch
      %41 = sbr.rel (0) target = $region13
    $region12: #{tpu_custom_call.1} parent=1 // pred_region
      %43 = vsyncadd [#allocation6], 0
      %s45 = sshll.u32 %s2, 4
      %s46 = int_to_ptr.hbm [resolvable:$true] %s45
      %s47 = sshll.u32 [#allocation7], 4
      %s48 = int_to_ptr.vmem [resolvable:$true] %s47
      %50 = dma.hbm_to_vmem [thread:$0]  %s46, 128, %s48, [#allocation6]
    $region13: #{tpu_custom_call.1} parent=1 // pred_fallthru
      _
    // Predicated region
    $region14: #{tpu_custom_call.1} parent=1 // pred_check
      _
    $region15: #{tpu_custom_call.1} parent=1 // pred_check_branch
      %52 = sbr.rel (0) target = $region17
    $region16: #{tpu_custom_call.1} parent=1 // pred_region
      %s53 = sadd.s32 0, 1
      %p54 = scmp.lt.s32.totalorder %s53, 0
      %s55 = scalar_select %p54, %s53, 0
      %57 = vsyncadd [#allocation9], 0
      %s58 = smul.addr %s55, 8
      %s59 = scalar_lea.hbm %s3, %s58
      %s61 = sshll.u32 %s59, 4
      %s62 = int_to_ptr.hbm [resolvable:$true] %s61
      %s63 = sshll.u32 [#allocation8], 4
      %s64 = int_to_ptr.vmem [resolvable:$true] %s63
      %66 = dma.hbm_to_vmem [thread:$0]  %s62, 128, %s64, [#allocation9]
    $region17: #{tpu_custom_call.1} parent=1 // pred_fallthru
      _
    // Predicated region
    $region18: #{tpu_custom_call.1} parent=1 // pred_check
      _
    $region19: #{tpu_custom_call.1} parent=1 // pred_check_branch
      %68 = sbr.rel (0) target = $region21
    $region20: #{tpu_custom_call.1} parent=1 // pred_region
      %70 = dma.done [#allocation3], 256
    $region21: #{tpu_custom_call.1} parent=1 // pred_fallthru
      _
    // Predicated region
    $region22: #{tpu_custom_call.1} parent=1 // pred_check
      _
    $region23: #{tpu_custom_call.1} parent=1 // pred_check_branch
      %72 = sbr.rel (0) target = $region25
    $region24: #{tpu_custom_call.1} parent=1 // pred_region
      %74 = dma.done [#allocation6], 128
    $region25: #{tpu_custom_call.1} parent=1 // pred_fallthru
      _
    // Predicated region
    $region26: #{tpu_custom_call.1} parent=1 // pred_check
      _
    $region27: #{tpu_custom_call.1} parent=1 // pred_check_branch
      %76 = sbr.rel (0) target = $region29
    $region28: #{tpu_custom_call.1} parent=1 // pred_region
      %78 = dma.done [#allocation6], 128
    $region29: #{tpu_custom_call.1} parent=1 // pred_fallthru
      _
    // Predicated region
    $region30: #{tpu_custom_call.1} parent=1 // pred_check
      _
    $region31: #{tpu_custom_call.1} parent=1 // pred_check_branch
      %80 = sbr.rel (0) target = $region33
    $region32: #{tpu_custom_call.1} parent=1 // pred_region
      %82 = dma.done [#allocation9], 128
    $region33: #{tpu_custom_call.1} parent=1 // pred_fallthru
      _
    %s83 = ssub.s32 0, 1
    %p84 = scmp.gt.s32.totalorder %s83, 0
    %s85 = scalar_select %p84, %s83, 0
    %s86 = sadd.s32 0, 1
    %p87 = scmp.lt.s32.totalorder %s86, 0
    %s88 = scalar_select %p87, %s86, 0
    %s89 = smul.u32 0, 128
    %v90 = vld [vmem:[#allocation2] sm:$0xff]
    %v91 = vld [vmem:[#allocation2 + $0x8] sm:$0xff]
    %p92 = scmp.eq.s32.totalorder 0, 0
    %v93 = vld [vmem:[#allocation5] sm:$0xff]
    %s94 = scalar_select %p92, 1, 0
    %v95 = vstv %s94
    %vm96 = vcmp.eq.s32.totalorder %v95, 1
    %v97 = vsel %vm96, %v90, %v93
    %v98 = vlaneseq
    %v99 = vand.u32 %v98, 127
    %v100 = vstv %s89
    %v101 = vadd.s32 %v100, %v99
    %vm102 = vcmp.ge.s32.totalorder %v101, 16
    %v103 = vld [vmem:[#allocation7] sm:$0xff]
    %v104 = vsel %vm102, 1, 0
    %vm105 = vcmp.eq.s32.totalorder %v104, 1
    %107 = vset.pattern.permute.xlu0 0
    %108 = vperm.xlu0 %107, %v91
    %v109 = vpop.permute.xlu0 %108
    %v111 = vsel %vm105, %v109, %v103
    %s112 = sadd.s32 %s89, 128
    %v113 = vstv %s112
    %v114 = vadd.s32 %v113, %v99
    %vm115 = vcmp.ge.s32.totalorder %v114, 16
    %v116 = vld [vmem:[#allocation8] sm:$0xff]
    %v117 = vsel %vm115, 1, 0
    %vm118 = vcmp.eq.s32.totalorder %v117, 1
    %v119 = vsel %vm118, %v91, %v116
    %v120 = vmul.f32 %v111, 0.018778928
    %v121 = vmul.f32 %v119, 0.018778928
    %v122 = vmul.f32 %v111, -0.11531475
    %v123 = vmul.f32 %v119, -0.11531475
    %126 = vrot.lane.b32.xlu0 %v122, 1
    %v127 = vpop.permute.xlu0 %126
    %128 = vrot.lane.b32.xlu0 %v123, 1
    %v129 = vpop.permute.xlu0 %128
    %vm130 = vcmask 7168
    %v131 = vsel %vm130, %v127, %v129
    %v134 = vadd.f32 %v120, %v127
    %v135 = vadd.f32 %v121, %v131
    %v136 = vmul.f32 %v111, 0.8864196
    %138 = vrot.lane.b32.xlu0 %v136, 2
    %v139 = vpop.permute.xlu0 %138
    %v141 = vadd.f32 %v134, %v139
    %v142 = vadd.f32 %v135, %v139
    %v143 = vmul.f32 %v97, 0.25714523
    %v144 = vmul.f32 %v111, 0.25714523
    %147 = vrot.lane.b32.xlu0 %v143, 3
    %v148 = vpop.permute.xlu0 %147
    %149 = vrot.lane.b32.xlu0 %v144, 3
    %v150 = vpop.permute.xlu0 %149
    %vm151 = vcmask 23552
    %v152 = vsel %vm151, %v148, %v150
    %v155 = vadd.f32 %v141, %v152
    %v156 = vadd.f32 %v142, %v150
    %v157 = vmul.f32 %v97, -0.05108693
    %v158 = vmul.f32 %v111, -0.05108693
    %161 = vrot.lane.b32.xlu0 %v157, 4
    %v162 = vpop.permute.xlu0 %161
    %163 = vrot.lane.b32.xlu0 %v158, 4
    %v164 = vpop.permute.xlu0 %163
    %vm165 = vcmask 31744
    %v166 = vsel %vm165, %v162, %v164
    %v169 = vadd.f32 %v155, %v166
    %v170 = vadd.f32 %v156, %v164
    %v171 = vmul.f32 %v97, 0.004057933
    %v172 = vmul.f32 %v111, 0.004057933
    %175 = vrot.lane.b32.xlu0 %v171, 5
    %v176 = vpop.permute.xlu0 %175
    %177 = vrot.lane.b32.xlu0 %v172, 5
    %v178 = vpop.permute.xlu0 %177
    %vm179 = vcmask 39936
    %v180 = vsel %vm179, %v176, %v178
    %v183 = vadd.f32 %v169, %v180
    %v184 = vadd.f32 %v170, %v178
    %187 = vrot.lane.b32.xlu0 %v183, 126
    %v188 = vpop.permute.xlu0 %187
    %189 = vrot.lane.b32.xlu0 %v184, 126
    %v190 = vpop.permute.xlu0 %189
    %vm191 = vcmask 1031168
    %v192 = vsel %vm191, %v188, %v190
    %194 = vst [vmem:[#allocation10] sm:$0xff] %v192
    %v195 = vmul.f32 %v119, 0.004057933
    %v196 = vmul.f32 %v119, -0.05108693
    %198 = vrot.lane.b32.xlu0 %v158, 1
    %v199 = vpop.permute.xlu0 %198
    %200 = vrot.lane.b32.xlu0 %v196, 1
    %v201 = vpop.permute.xlu0 %200
    %v202 = vsel %vm130, %v199, %v201
    %v205 = vadd.f32 %v172, %v199
    %v206 = vadd.f32 %v195, %v202
    %v207 = vmul.f32 %v119, 0.25714523
    %209 = vrot.lane.b32.xlu0 %v144, 2
    %v210 = vpop.permute.xlu0 %209
    %211 = vrot.lane.b32.xlu0 %v207, 2
    %v212 = vpop.permute.xlu0 %211
    %vm213 = vcmask 15360
    %v214 = vsel %vm213, %v210, %v212
    %v217 = vadd.f32 %v205, %v210
    %v218 = vadd.f32 %v206, %v214
    %219 = vrot.lane.b32.xlu0 %v136, 3
    %v220 = vpop.permute.xlu0 %219
    %v222 = vadd.f32 %v217, %v220
    %v223 = vadd.f32 %v218, %v220
    %v224 = vmul.f32 %v97, -0.11531475
    %226 = vrot.lane.b32.xlu0 %v224, 4
    %v227 = vpop.permute.xlu0 %226
    %228 = vrot.lane.b32.xlu0 %v122, 4
    %v229 = vpop.permute.xlu0 %228
    %v230 = vsel %vm165, %v227, %v229
    %v233 = vadd.f32 %v222, %v230
    %v234 = vadd.f32 %v223, %v229
    %v235 = vmul.f32 %v97, 0.018778928
    %238 = vrot.lane.b32.xlu0 %v235, 5
    %v239 = vpop.permute.xlu0 %238
    %240 = vrot.lane.b32.xlu0 %v120, 5
    %v241 = vpop.permute.xlu0 %240
    %v242 = vsel %vm179, %v239, %v241
    %v245 = vadd.f32 %v233, %v242
    %v246 = vadd.f32 %v234, %v241
    %249 = vrot.lane.b32.xlu0 %v245, 125
    %v250 = vpop.permute.xlu0 %249
    %251 = vrot.lane.b32.xlu0 %v246, 125
    %v252 = vpop.permute.xlu0 %251
    %vm253 = vcmask 1022976
    %v254 = vsel %vm253, %v250, %v252
    %s256 = scalar_lea.vmem [#allocation10], 8
    %257 = vst [vmem:[%s256] sm:$0xff] %v254
    // Predicated region
    $region34: #{tpu_custom_call.1} parent=1 // pred_check
      _
    $region35: #{tpu_custom_call.1} parent=1 // pred_check_branch
      %259 = sbr.rel (0) target = $region37
    $region36: #{tpu_custom_call.1} parent=1 // pred_region
      %261 = vsyncadd [#allocation4], 0
      %s262 = sshll.u32 [#allocation10], 4
      %s263 = int_to_ptr.vmem [resolvable:$true] %s262
      %s264 = sshll.u32 %s4, 4
      %s265 = int_to_ptr.hbm [resolvable:$true] %s264
      %270 = dma.vmem_to_hbm [thread:$0]  %s263, 256, %s265, [#allocation4], 128, 128, 8
    $region37: #{tpu_custom_call.1} parent=1 // pred_fallthru
      _
    // Predicated region
    $region38: #{tpu_custom_call.1} parent=1 // pred_check
      _
    $region39: #{tpu_custom_call.1} parent=1 // pred_check_branch
      %272 = sbr.rel (0) target = $region41
    $region40: #{tpu_custom_call.1} parent=1 // pred_region
      %274 = dma.done [#allocation4], 256
    $region41: #{tpu_custom_call.1} parent=1 // pred_fallthru
      _
    %275 = vsyncpa [#allocation3], 1
    %276 = vsyncpa [#allocation6], 1
    %277 = vsyncpa [#allocation9], 1
    %278 = vsyncpa [#allocation4], 1

</llo_original>
